<compile_context>
chip_gen: v6e
topology: v6e:2x2x1
jax: 0.10.0
libtpu: 0.0.40
codegen_flags: <defaults>
</compile_context>

<pallas_src>
import jax
import jax.numpy as jnp
from jax.experimental import pallas as pl
from jax.experimental.pallas import tpu as pltpu
import numpy as np


def head_kernel(rob_ref, v1_ref, v2_ref,
                wq1_ref, wq2_ref, bq_ref,
                wb1_ref, wb2_ref, bb_ref,
                wc_ref, bc_ref,
                logits_ref):
    rob = rob_ref[...]            # (N, H) f32  RoBERTa pooled output
    v1 = v1_ref[...]              # (N, H) f32  ViT CLS for images1
    v2 = v2_ref[...]              # (N, H) f32  ViT CLS for images2

    # att_ques: tanh(cat([rob, v1], 1) @ Wq^T + bq)  == rob@Wq1 + v1@Wq2 + bq
    # Weights are bf16 (HBM-bandwidth bound); MXU accumulates in f32.
    aq = jnp.tanh(
        jnp.dot(rob.astype(jnp.bfloat16), wq1_ref[...],
                preferred_element_type=jnp.float32)
        + jnp.dot(v1.astype(jnp.bfloat16), wq2_ref[...],
                  preferred_element_type=jnp.float32)
        + bq_ref[...])
    aq = aq * v1                                       # out_att_ques * out_vit1
    ques_part = jnp.sum(aq, axis=0, keepdims=True)     # sum over dim=0 -> (1, H)
    ques_part_out = rob * ques_part                    # (N, H), broadcast

    # att_bd: tanh(cat([v2, ques_part_out], 1) @ Wb^T + bb)
    ab = jnp.tanh(
        jnp.dot(v2.astype(jnp.bfloat16), wb1_ref[...],
                preferred_element_type=jnp.float32)
        + jnp.dot(ques_part_out.astype(jnp.bfloat16), wb2_ref[...],
                  preferred_element_type=jnp.float32)
        + bb_ref[...])
    ab = ab * v2                                       # out_att_bd * out_vit2
    bd_part = jnp.sum(ab, axis=0, keepdims=True)       # (1, H)

    final_out = bd_part * ques_part_out                # (N, H)
    # dropout(p=0.1) is identity in eval mode.
    # classifier: Linear(H, 1) done as a lane reduction (avoids a width-1 MXU op)
    logits = (jnp.sum(final_out * wc_ref[...], axis=1, keepdims=True)
              + bc_ref[0, 0])                          # scalar bias from SMEM
    logits_ref[...] = logits                           # (N, 1)


def vit_bd_head(rob, v1, v2, wq1, wq2, bq, wb1, wb2, bb, wc, bc):
    N, H = rob.shape

    # bf16 projection weights (biggest HBM-byte consumer); activations/biases
    # stay f32; scalar classifier bias goes to SMEM.
    wq1 = wq1.astype(jnp.bfloat16)
    wq2 = wq2.astype(jnp.bfloat16)
    wb1 = wb1.astype(jnp.bfloat16)
    wb2 = wb2.astype(jnp.bfloat16)

    vmem = pl.BlockSpec(memory_space=pltpu.MemorySpace.VMEM)  # whole array, no pipelining
    smem = pl.BlockSpec(memory_space=pltpu.MemorySpace.SMEM)

    in_specs = [vmem, vmem, vmem,        # rob, v1, v2
                vmem, vmem, vmem,        # wq1, wq2, bq
                vmem, vmem, vmem,        # wb1, wb2, bb
                vmem, smem]              # wc, bc (scalar)

    return pl.pallas_call(
        head_kernel,
        in_specs=in_specs,
        out_specs=vmem,
        out_shape=jax.ShapeDtypeStruct((N, 1), jnp.float32),
        compiler_params=pltpu.CompilerParams(
            vmem_limit_bytes=32 * 1024 * 1024),
    )(rob, v1, v2, wq1, wq2, bq, wb1, wb2, bb, wc, bc)


def reference_head(rob, v1, v2, wq1, wq2, bq, wb1, wb2, bb, wc, bc):
    # Pure-JAX reference that emulates the kernel's bf16 matmul operands
    # (f32 accumulation), so the comparison isolates kernel bugs rather than
    # the intentional bf16 weight quantization.
    def b(x):
        return x.astype(jnp.bfloat16).astype(jnp.float32)
    aq = jnp.tanh(b(rob) @ b(wq1) + b(v1) @ b(wq2) + bq) * v1
    ques_part_out = rob * jnp.sum(aq, axis=0, keepdims=True)
    ab = jnp.tanh(b(v2) @ b(wb1) + b(ques_part_out) @ b(wb2) + bb) * v2
    final_out = jnp.sum(ab, axis=0, keepdims=True) * ques_part_out
    return jnp.sum(final_out * wc, axis=1, keepdims=True) + bc


if __name__ == "__main__":
    # Small shapes consistent with the module: batch=2, num_choices=4,
    # hidden H=128 (stands in for 1024; concat dim = 2H stands in for 2048).
    batch, num_choices, H = 2, 4, 128
    N = batch * num_choices

    key = jax.random.PRNGKey(0)
    ks = jax.random.split(key, 10)

    # Backbone features (stand-ins for roberta pooled output / ViT CLS tokens).
    rob = jax.random.normal(ks[0], (N, H), jnp.float32)
    v1 = jax.random.normal(ks[1], (N, H), jnp.float32)
    v2 = jax.random.normal(ks[2], (N, H), jnp.float32)

    # att_ques: Linear(2H, H)  (torch weight (H, 2H) -> transposed & split)
    scale = 0.02
    wq1 = scale * jax.random.normal(ks[3], (H, H), jnp.float32)   # multiplies rob
    wq2 = scale * jax.random.normal(ks[4], (H, H), jnp.float32)   # multiplies v1
    bq = scale * jax.random.normal(ks[5], (1, H), jnp.float32)
    # att_bd: Linear(2H, H)
    wb1 = scale * jax.random.normal(ks[6], (H, H), jnp.float32)   # multiplies v2
    wb2 = scale * jax.random.normal(ks[7], (H, H), jnp.float32)   # multiplies ques_part_out
    bb = scale * jax.random.normal(ks[8], (1, H), jnp.float32)
    # classifier: Linear(H, 1) -> weight row (1, H), bias (1, 1)
    wc = scale * jax.random.normal(ks[9], (1, H), jnp.float32)
    bc = jnp.zeros((1, 1), jnp.float32)

    logits = vit_bd_head(rob, v1, v2, wq1, wq2, bq, wb1, wb2, bb, wc, bc)
    logits = jax.block_until_ready(logits)

    # Glue: reshape to (batch, num_choices) and optional cross-entropy loss,
    # exactly as in the torch module's tail.
    reshaped_logits = logits.reshape(-1, num_choices)
    labels = jnp.array([1, 2], jnp.int32)
    logp = jax.nn.log_softmax(reshaped_logits, axis=-1)
    loss = -jnp.mean(jnp.take_along_axis(logp, labels[:, None], axis=1))
    loss = jax.block_until_ready(loss)

    # Correctness check against a pure-JAX reference (bf16-weight-aware).
    ref = reference_head(rob, v1, v2, wq1, wq2, bq, wb1, wb2, bb, wc, bc)
    np.testing.assert_allclose(np.asarray(logits), np.asarray(ref),
                               rtol=2e-2, atol=2e-2)

    print("KERNEL_OK")
</pallas_src>

<mosaic_0001>
module attributes {stable_mosaic.version = 11 : i64} {
  func.func @head_kernel(%arg0: memref<8x128xf32, #tpu.memory_space<vmem>>, %arg1: memref<8x128xf32, #tpu.memory_space<vmem>>, %arg2: memref<8x128xf32, #tpu.memory_space<vmem>>, %arg3: memref<128x128xbf16, #tpu.memory_space<vmem>>, %arg4: memref<128x128xbf16, #tpu.memory_space<vmem>>, %arg5: memref<1x128xf32, #tpu.memory_space<vmem>>, %arg6: memref<128x128xbf16, #tpu.memory_space<vmem>>, %arg7: memref<128x128xbf16, #tpu.memory_space<vmem>>, %arg8: memref<1x128xf32, #tpu.memory_space<vmem>>, %arg9: memref<1x128xf32, #tpu.memory_space<vmem>>, %arg10: memref<1x1xf32, #tpu.memory_space<smem>>, %arg11: memref<8x1xf32, #tpu.memory_space<vmem>>) attributes {dimension_semantics = [], scalar_prefetch = 0 : i64, scratch_operands = 0 : i64, tpu.core_type = #tpu.core_type<tc>} {
    %c0 = arith.constant 0 : index
    %c0_0 = arith.constant 0 : index
    %0 = vector.load %arg0[%c0, %c0_0] : memref<8x128xf32, #tpu.memory_space<vmem>>, vector<8x128xf32>
    %c0_1 = arith.constant 0 : index
    %c0_2 = arith.constant 0 : index
    %1 = vector.load %arg1[%c0_1, %c0_2] : memref<8x128xf32, #tpu.memory_space<vmem>>, vector<8x128xf32>
    %c0_3 = arith.constant 0 : index
    %c0_4 = arith.constant 0 : index
    %2 = vector.load %arg2[%c0_3, %c0_4] : memref<8x128xf32, #tpu.memory_space<vmem>>, vector<8x128xf32>
    %3 = arith.truncf %0 : vector<8x128xf32> to vector<8x128xbf16>
    %c0_5 = arith.constant 0 : index
    %c0_6 = arith.constant 0 : index
    %4 = vector.load %arg3[%c0_5, %c0_6] : memref<128x128xbf16, #tpu.memory_space<vmem>>, vector<128x128xbf16>
    %cst = arith.constant dense<0.000000e+00> : vector<8x128xf32>
    %5 = tpu.matmul %3, %4, %cst {dimension_numbers = #tpu.dot_dimension_numbers<[1], [0], [0], [1], [0, 0, 1, 1], [], []>} : vector<8x128xbf16>, vector<128x128xbf16>, vector<8x128xf32> -> vector<8x128xf32>
    %6 = arith.truncf %1 : vector<8x128xf32> to vector<8x128xbf16>
    %c0_7 = arith.constant 0 : index
    %c0_8 = arith.constant 0 : index
    %7 = vector.load %arg4[%c0_7, %c0_8] : memref<128x128xbf16, #tpu.memory_space<vmem>>, vector<128x128xbf16>
    %cst_9 = arith.constant dense<0.000000e+00> : vector<8x128xf32>
    %8 = tpu.matmul %6, %7, %cst_9 {dimension_numbers = #tpu.dot_dimension_numbers<[1], [0], [0], [1], [0, 0, 1, 1], [], []>} : vector<8x128xbf16>, vector<128x128xbf16>, vector<8x128xf32> -> vector<8x128xf32>
    %9 = arith.addf %5, %8 : vector<8x128xf32>
    %c0_10 = arith.constant 0 : index
    %c0_11 = arith.constant 0 : index
    %10 = vector.load %arg5[%c0_10, %c0_11] : memref<1x128xf32, #tpu.memory_space<vmem>>, vector<1x128xf32>
    %11 = vector.broadcast %10 : vector<1x128xf32> to vector<8x128xf32>
    %12 = arith.addf %9, %11 : vector<8x128xf32>
    %13 = math.tanh %12 : vector<8x128xf32>
    %14 = arith.mulf %13, %1 : vector<8x128xf32>
    %cst_12 = arith.constant dense<0.000000e+00> : vector<128xf32>
    %15 = vector.multi_reduction <add>, %14, %cst_12 [0] : vector<8x128xf32> to vector<128xf32>
    %16 = vector.shape_cast %15 : vector<128xf32> to vector<1x128xf32>
    %17 = vector.broadcast %16 : vector<1x128xf32> to vector<8x128xf32>
    %18 = arith.mulf %0, %17 : vector<8x128xf32>
    %19 = arith.truncf %2 : vector<8x128xf32> to vector<8x128xbf16>
    %c0_13 = arith.constant 0 : index
    %c0_14 = arith.constant 0 : index
    %20 = vector.load %arg6[%c0_13, %c0_14] : memref<128x128xbf16, #tpu.memory_space<vmem>>, vector<128x128xbf16>
    %cst_15 = arith.constant dense<0.000000e+00> : vector<8x128xf32>
    %21 = tpu.matmul %19, %20, %cst_15 {dimension_numbers = #tpu.dot_dimension_numbers<[1], [0], [0], [1], [0, 0, 1, 1], [], []>} : vector<8x128xbf16>, vector<128x128xbf16>, vector<8x128xf32> -> vector<8x128xf32>
    %22 = arith.truncf %18 : vector<8x128xf32> to vector<8x128xbf16>
    %c0_16 = arith.constant 0 : index
    %c0_17 = arith.constant 0 : index
    %23 = vector.load %arg7[%c0_16, %c0_17] : memref<128x128xbf16, #tpu.memory_space<vmem>>, vector<128x128xbf16>
    %cst_18 = arith.constant dense<0.000000e+00> : vector<8x128xf32>
    %24 = tpu.matmul %22, %23, %cst_18 {dimension_numbers = #tpu.dot_dimension_numbers<[1], [0], [0], [1], [0, 0, 1, 1], [], []>} : vector<8x128xbf16>, vector<128x128xbf16>, vector<8x128xf32> -> vector<8x128xf32>
    %25 = arith.addf %21, %24 : vector<8x128xf32>
    %c0_19 = arith.constant 0 : index
    %c0_20 = arith.constant 0 : index
    %26 = vector.load %arg8[%c0_19, %c0_20] : memref<1x128xf32, #tpu.memory_space<vmem>>, vector<1x128xf32>
    %27 = vector.broadcast %26 : vector<1x128xf32> to vector<8x128xf32>
    %28 = arith.addf %25, %27 : vector<8x128xf32>
    %29 = math.tanh %28 : vector<8x128xf32>
    %30 = arith.mulf %29, %2 : vector<8x128xf32>
    %cst_21 = arith.constant dense<0.000000e+00> : vector<128xf32>
    %31 = vector.multi_reduction <add>, %30, %cst_21 [0] : vector<8x128xf32> to vector<128xf32>
    %32 = vector.shape_cast %31 : vector<128xf32> to vector<1x128xf32>
    %33 = vector.broadcast %32 : vector<1x128xf32> to vector<8x128xf32>
    %34 = arith.mulf %33, %18 : vector<8x128xf32>
    %c0_22 = arith.constant 0 : index
    %c0_23 = arith.constant 0 : index
    %35 = vector.load %arg9[%c0_22, %c0_23] : memref<1x128xf32, #tpu.memory_space<vmem>>, vector<1x128xf32>
    %36 = vector.broadcast %35 : vector<1x128xf32> to vector<8x128xf32>
    %37 = arith.mulf %34, %36 : vector<8x128xf32>
    %cst_24 = arith.constant dense<0.000000e+00> : vector<8xf32>
    %38 = vector.multi_reduction <add>, %37, %cst_24 [1] : vector<8x128xf32> to vector<8xf32>
    %39 = vector.shape_cast %38 : vector<8xf32> to vector<8x1xf32>
    %c0_25 = arith.constant 0 : index
    %c0_26 = arith.constant 0 : index
    %40 = memref.load %arg10[%c0_25, %c0_26] : memref<1x1xf32, #tpu.memory_space<smem>>
    %41 = vector.broadcast %40 : f32 to vector<8x1xf32>
    %42 = arith.addf %39, %41 : vector<8x1xf32>
    %c0_27 = arith.constant 0 : index
    %c0_28 = arith.constant 0 : index
    %43 = vector.load %arg11[%c0_27, %c0_28] : memref<8x1xf32, #tpu.memory_space<vmem>>, vector<8x1xf32>
    tpu.vector_store %arg11[%c0_27, %c0_28], %42 {strides = array<i32>} : memref<8x1xf32, #tpu.memory_space<vmem>>, vector<8x1xf32>,
    return
  }
}

</mosaic_0001>

<llo_original>
// kernel: tpu_custom_call.1
$region0: #{tpu_custom_call.1}
  #allocation0 [shape = 'u32[]', space=smem, size = 0x4, offset = 0x4, fixed_abs, tag = 'smem constant byte address 0x4 - core index']
  #allocation1 [shape = 'u32[144,128]{1,0:T(1,128)}', space=vmem, size = 0x12000, scoped, tag = 'internal scratch']
  #allocation2 [shape = 'f32[1,1]{1,0:T(1,128)S(6)}', space=smem, size = 0x200, scoped, tag = 'scoped memory for tpu_custom_call.1']
  %s0 = inlined_call_operand.hbm [shape: f32[8,128], index: 0, kind: input, shape index: {}]
  %s1 = inlined_call_operand.hbm [shape: f32[8,128], index: 1, kind: input, shape index: {}]
  %s2 = inlined_call_operand.hbm [shape: f32[8,128], index: 2, kind: input, shape index: {}]
  %s3 = inlined_call_operand.hbm [shape: bf16[128,128], index: 3, kind: input, shape index: {}]
  %s4 = inlined_call_operand.hbm [shape: bf16[128,128], index: 4, kind: input, shape index: {}]
  %s5 = inlined_call_operand.vmem [shape: f32[1,128], index: 5, kind: input, shape index: {}]
  %s6 = inlined_call_operand.hbm [shape: bf16[128,128], index: 6, kind: input, shape index: {}]
  %s7 = inlined_call_operand.hbm [shape: bf16[128,128], index: 7, kind: input, shape index: {}]
  %s8 = inlined_call_operand.vmem [shape: f32[1,128], index: 8, kind: input, shape index: {}]
  %s9 = inlined_call_operand.vmem [shape: f32[1,128], index: 9, kind: input, shape index: {}]
  %s10 = inlined_call_operand.<no memory space> [shape: f32[1,1], index: 10, kind: input, shape index: {}]
  %s11 = inlined_call_operand.vmem [shape: f32[8,1], index: 11, kind: output, shape index: {}]
  %s12 = sld [smem:[#allocation0]]
  $region82: #{tpu_custom_call.1} parent=0
    _
  %s14 = ssub.s32 1, %s12
  %s15 = scalar_select 0, %s14, %s12
  %16 = sst [smem:[#allocation2]] %s10
  $region1: #{tpu_custom_call.1} parent=0
    #allocation3 [shape = 'u8[4096]{0}', space=vmem, size = 0x1000, scoped, tag = 'input window, operand 0, single buffered']
    #allocation4 [shape = 's32[1]{0}', space=sflag, size = 0x4, scoped, tag = 'scoped memory for tpu_custom_call.1']
    #allocation5 [shape = 'u8[4096]{0}', space=vmem, size = 0x1000, scoped, tag = 'input window, operand 1, single buffered']
    #allocation6 [shape = 's32[1]{0}', space=sflag, size = 0x4, scoped, tag = 'scoped memory for tpu_custom_call.1']
    #allocation7 [shape = 'u8[4096]{0}', space=vmem, size = 0x1000, scoped, tag = 'input window, operand 2, single buffered']
    #allocation8 [shape = 'u8[32768]{0}', space=vmem, size = 0x8000, scoped, tag = 'input window, operand 3, single buffered']
    #allocation9 [shape = 's32[1]{0}', space=sflag, size = 0x4, scoped, tag = 'scoped memory for tpu_custom_call.1']
    #allocation10 [shape = 'u8[32768]{0}', space=vmem, size = 0x8000, scoped, tag = 'input window, operand 4, single buffered']
    #allocation11 [shape = 'u8[32768]{0}', space=vmem, size = 0x8000, scoped, tag = 'input window, operand 6, single buffered']
    #allocation12 [shape = 's32[1]{0}', space=sflag, size = 0x4, scoped, tag = 'scoped memory for tpu_custom_call.1']
    #allocation13 [shape = 'u8[32768]{0}', space=vmem, size = 0x8000, scoped, tag = 'input window, operand 7, single buffered']
    %17 = vsyncpa [#allocation4], 0
    %18 = vsyncpa [#allocation6], 0
    %19 = vsyncpa [#allocation9], 0
    %20 = vsyncpa [#allocation12], 0
    // Predicated region
    $region2: #{tpu_custom_call.1} parent=1 // pred_check
      _
    $region3: #{tpu_custom_call.1} parent=1 // pred_check_branch
      %22 = sbr.rel (0) target = $region5
    $region4: #{tpu_custom_call.1} parent=1 // pred_region
      %s24 = ssub.s32 128, 128
      %25 = vsyncadd [#allocation4], %s24
      %s27 = sshll.u32 [#allocation3], 4
      %s28 = int_to_ptr.vmem [resolvable:$true] %s27
      %30 = dma.hbm_to_vmem [thread:$0]  %s0, 128, %s28, [#allocation4]
    $region5: #{tpu_custom_call.1} parent=1 // pred_fallthru
      _
    // Predicated region
    $region6: #{tpu_custom_call.1} parent=1 // pred_check
      _
    $region7: #{tpu_custom_call.1} parent=1 // pred_check_branch
      %32 = sbr.rel (0) target = $region9
    $region8: #{tpu_custom_call.1} parent=1 // pred_region
      %s34 = ssub.s32 128, 128
      %35 = vsyncadd [#allocation6], %s34
      %s37 = sshll.u32 [#allocation5], 4
      %s38 = int_to_ptr.vmem [resolvable:$true] %s37
      %40 = dma.hbm_to_vmem [thread:$0]  %s1, 128, %s38, [#allocation6]
    $region9: #{tpu_custom_call.1} parent=1 // pred_fallthru
      _
    // Predicated region
    $region10: #{tpu_custom_call.1} parent=1 // pred_check
      _
    $region11: #{tpu_custom_call.1} parent=1 // pred_check_branch
      %42 = sbr.rel (0) target = $region13
    $region12: #{tpu_custom_call.1} parent=1 // pred_region
      %s44 = ssub.s32 128, 128
      %45 = vsyncadd [#allocation6], %s44
      %s47 = sshll.u32 [#allocation7], 4
      %s48 = int_to_ptr.vmem [resolvable:$true] %s47
      %50 = dma.hbm_to_vmem [thread:$0]  %s2, 128, %s48, [#allocation6]
    $region13: #{tpu_custom_call.1} parent=1 // pred_fallthru
      _
    // Predicated region
    $region14: #{tpu_custom_call.1} parent=1 // pred_check
      _
    $region15: #{tpu_custom_call.1} parent=1 // pred_check_branch
      %52 = sbr.rel (0) target = $region17
    $region16: #{tpu_custom_call.1} parent=1 // pred_region
      %s54 = ssub.s32 1024, 1024
      %55 = vsyncadd [#allocation9], %s54
      %s56 = sshll.u32 [#allocation8], 4
      %s57 = int_to_ptr.vmem [resolvable:$true] %s56
      %62 = dma.hbm_to_vmem [thread:$0]  %s3, 1024, %s57, [#allocation9], 64, 64, 4
    $region17: #{tpu_custom_call.1} parent=1 // pred_fallthru
      _
    // Predicated region
    $region18: #{tpu_custom_call.1} parent=1 // pred_check
      _
    $region19: #{tpu_custom_call.1} parent=1 // pred_check_branch
      %64 = sbr.rel (0) target = $region21
    $region20: #{tpu_custom_call.1} parent=1 // pred_region
      %s66 = ssub.s32 1024, 1024
      %67 = vsyncadd [#allocation9], %s66
      %s68 = sshll.u32 [#allocation10], 4
      %s69 = int_to_ptr.vmem [resolvable:$true] %s68
      %74 = dma.hbm_to_vmem [thread:$0]  %s4, 1024, %s69, [#allocation9], 64, 64, 4
    $region21: #{tpu_custom_call.1} parent=1 // pred_fallthru
      _
    // Predicated region
    $region22: #{tpu_custom_call.1} parent=1 // pred_check
      _
    $region23: #{tpu_custom_call.1} parent=1 // pred_check_branch
      %76 = sbr.rel (0) target = $region25
    $region24: #{tpu_custom_call.1} parent=1 // pred_region
      _
    $region25: #{tpu_custom_call.1} parent=1 // pred_fallthru
      _
    // Predicated region
    $region26: #{tpu_custom_call.1} parent=1 // pred_check
      _
    $region27: #{tpu_custom_call.1} parent=1 // pred_check_branch
      %78 = sbr.rel (0) target = $region29
    $region28: #{tpu_custom_call.1} parent=1 // pred_region
      %s80 = ssub.s32 1024, 1024
      %81 = vsyncadd [#allocation12], %s80
      %s82 = sshll.u32 [#allocation11], 4
      %s83 = int_to_ptr.vmem [resolvable:$true] %s82
      %88 = dma.hbm_to_vmem [thread:$0]  %s6, 1024, %s83, [#allocation12], 64, 64, 4
    $region29: #{tpu_custom_call.1} parent=1 // pred_fallthru
      _
    // Predicated region
    $region30: #{tpu_custom_call.1} parent=1 // pred_check
      _
    $region31: #{tpu_custom_call.1} parent=1 // pred_check_branch
      %90 = sbr.rel (0) target = $region33
    $region32: #{tpu_custom_call.1} parent=1 // pred_region
      %s92 = ssub.s32 1024, 1024
      %93 = vsyncadd [#allocation12], %s92
      %s94 = sshll.u32 [#allocation13], 4
      %s95 = int_to_ptr.vmem [resolvable:$true] %s94
      %100 = dma.hbm_to_vmem [thread:$0]  %s7, 1024, %s95, [#allocation12], 64, 64, 4
    $region33: #{tpu_custom_call.1} parent=1 // pred_fallthru
      _
    // Predicated region
    $region34: #{tpu_custom_call.1} parent=1 // pred_check
      _
    $region35: #{tpu_custom_call.1} parent=1 // pred_check_branch
      %102 = sbr.rel (0) target = $region37
    $region36: #{tpu_custom_call.1} parent=1 // pred_region
      _
    $region37: #{tpu_custom_call.1} parent=1 // pred_fallthru
      _
    // Predicated region
    $region38: #{tpu_custom_call.1} parent=1 // pred_check
      _
    $region39: #{tpu_custom_call.1} parent=1 // pred_check_branch
      %104 = sbr.rel (0) target = $region41
    $region40: #{tpu_custom_call.1} parent=1 // pred_region
      _
    $region41: #{tpu_custom_call.1} parent=1 // pred_fallthru
      _
    // Predicated region
    $region42: #{tpu_custom_call.1} parent=1 // pred_check
      _
    $region43: #{tpu_custom_call.1} parent=1 // pred_check_branch
      %106 = sbr.rel (0) target = $region45
    $region44: #{tpu_custom_call.1} parent=1 // pred_region
      _
    $region45: #{tpu_custom_call.1} parent=1 // pred_fallthru
      _
    // Predicated region
    $region46: #{tpu_custom_call.1} parent=1 // pred_check
      _
    $region47: #{tpu_custom_call.1} parent=1 // pred_check_branch
      %108 = sbr.rel (0) target = $region49
    $region48: #{tpu_custom_call.1} parent=1 // pred_region
      %109 = dma.done [#allocation4], 128
    $region49: #{tpu_custom_call.1} parent=1 // pred_fallthru
      _
    // Predicated region
    $region50: #{tpu_custom_call.1} parent=1 // pred_check
      _
    $region51: #{tpu_custom_call.1} parent=1 // pred_check_branch
      %111 = sbr.rel (0) target = $region53
    $region52: #{tpu_custom_call.1} parent=1 // pred_region
      %112 = dma.done [#allocation6], 128
    $region53: #{tpu_custom_call.1} parent=1 // pred_fallthru
      _
    // Predicated region
    $region54: #{tpu_custom_call.1} parent=1 // pred_check
      _
    $region55: #{tpu_custom_call.1} parent=1 // pred_check_branch
      %114 = sbr.rel (0) target = $region57
    $region56: #{tpu_custom_call.1} parent=1 // pred_region
      %115 = dma.done [#allocation6], 128
    $region57: #{tpu_custom_call.1} parent=1 // pred_fallthru
      _
    // Predicated region
    $region58: #{tpu_custom_call.1} parent=1 // pred_check
      _
    $region59: #{tpu_custom_call.1} parent=1 // pred_check_branch
      %117 = sbr.rel (0) target = $region61
    $region60: #{tpu_custom_call.1} parent=1 // pred_region
      %118 = dma.done [#allocation9], 1024
    $region61: #{tpu_custom_call.1} parent=1 // pred_fallthru
      _
    // Predicated region
    $region62: #{tpu_custom_call.1} parent=1 // pred_check
      _
    $region63: #{tpu_custom_call.1} parent=1 // pred_check_branch
      %120 = sbr.rel (0) target = $region65
    $region64: #{tpu_custom_call.1} parent=1 // pred_region
      %121 = dma.done [#allocation9], 1024
    $region65: #{tpu_custom_call.1} parent=1 // pred_fallthru
      _
    // Predicated region
    $region66: #{tpu_custom_call.1} parent=1 // pred_check
      _
    $region67: #{tpu_custom_call.1} parent=1 // pred_check_branch
      %123 = sbr.rel (0) target = $region69
    $region68: #{tpu_custom_call.1} parent=1 // pred_region
      %124 = dma.done [#allocation12], 1024
    $region69: #{tpu_custom_call.1} parent=1 // pred_fallthru
      _
    // Predicated region
    $region70: #{tpu_custom_call.1} parent=1 // pred_check
      _
    $region71: #{tpu_custom_call.1} parent=1 // pred_check_branch
      %126 = sbr.rel (0) target = $region73
    $region72: #{tpu_custom_call.1} parent=1 // pred_region
      %127 = dma.done [#allocation12], 1024
    $region73: #{tpu_custom_call.1} parent=1 // pred_fallthru
      _
    %v129 = vld [vmem:[#allocation3] sm:$0xff]
    %v130 = vld [vmem:[#allocation5] sm:$0xff]
    %v131 = vld [vmem:[#allocation7] sm:$0xff]
    %v132 = vpack.c.bf16 %v129, %v129
    %v133 = vld [vmem:[#allocation8] sm:$0xf]
    %v134 = vld [vmem:[#allocation8 + $0x4] sm:$0xf]
    %v135 = vld [vmem:[#allocation8 + $0x8] sm:$0xf]
    %v136 = vld [vmem:[#allocation8 + $0xc] sm:$0xf]
    %v137 = vld [vmem:[#allocation8 + $0x10] sm:$0xf]
    %v138 = vld [vmem:[#allocation8 + $0x14] sm:$0xf]
    %v139 = vld [vmem:[#allocation8 + $0x18] sm:$0xf]
    %v140 = vld [vmem:[#allocation8 + $0x1c] sm:$0xf]
    %v141 = vld [vmem:[#allocation8 + $0x20] sm:$0xf]
    %v142 = vld [vmem:[#allocation8 + $0x24] sm:$0xf]
    %v143 = vld [vmem:[#allocation8 + $0x28] sm:$0xf]
    %v144 = vld [vmem:[#allocation8 + $0x2c] sm:$0xf]
    %v145 = vld [vmem:[#allocation8 + $0x30] sm:$0xf]
    %v146 = vld [vmem:[#allocation8 + $0x34] sm:$0xf]
    %v147 = vld [vmem:[#allocation8 + $0x38] sm:$0xf]
    %v148 = vld [vmem:[#allocation8 + $0x3c] sm:$0xf]
    %v149 = vpack.c.bf16 %v130, %v130
    %v150 = vld [vmem:[#allocation10] sm:$0xf]
    %v151 = vld [vmem:[#allocation10 + $0x4] sm:$0xf]
    %v152 = vld [vmem:[#allocation10 + $0x8] sm:$0xf]
    %v153 = vld [vmem:[#allocation10 + $0xc] sm:$0xf]
    %v154 = vld [vmem:[#allocation10 + $0x10] sm:$0xf]
    %v155 = vld [vmem:[#allocation10 + $0x14] sm:$0xf]
    %v156 = vld [vmem:[#allocation10 + $0x18] sm:$0xf]
    %v157 = vld [vmem:[#allocation10 + $0x1c] sm:$0xf]
    %v158 = vld [vmem:[#allocation10 + $0x20] sm:$0xf]
    %v159 = vld [vmem:[#allocation10 + $0x24] sm:$0xf]
    %v160 = vld [vmem:[#allocation10 + $0x28] sm:$0xf]
    %v161 = vld [vmem:[#allocation10 + $0x2c] sm:$0xf]
    %v162 = vld [vmem:[#allocation10 + $0x30] sm:$0xf]
    %v163 = vld [vmem:[#allocation10 + $0x34] sm:$0xf]
    %v164 = vld [vmem:[#allocation10 + $0x38] sm:$0xf]
    %v165 = vld [vmem:[#allocation10 + $0x3c] sm:$0xf]
    %v182 = vunpack.c.l.b16 %v150
    %v183 = vunpack.c.l.b16 %v151
    %v184 = vunpack.c.l.b16 %v152
    %v185 = vunpack.c.l.b16 %v153
    %v186 = vunpack.c.l.b16 %v154
    %v187 = vunpack.c.l.b16 %v155
    %v188 = vunpack.c.l.b16 %v156
    %v189 = vunpack.c.l.b16 %v157
    %v190 = vunpack.c.l.b16 %v158
    %v191 = vunpack.c.l.b16 %v159
    %v192 = vunpack.c.l.b16 %v160
    %v193 = vunpack.c.l.b16 %v161
    %v194 = vunpack.c.l.b16 %v162
    %v195 = vunpack.c.l.b16 %v163
    %v196 = vunpack.c.l.b16 %v164
    %v197 = vunpack.c.l.b16 %v165
    %v198 = vpack.c.b16 %v183, %v182
    %v199 = vpack.c.b16 %v185, %v184
    %v200 = vpack.c.b16 %v187, %v186
    %v201 = vpack.c.b16 %v189, %v188
    %v202 = vpack.c.b16 %v191, %v190
    %v203 = vpack.c.b16 %v193, %v192
    %v204 = vpack.c.b16 %v195, %v194
    %v205 = vpack.c.b16 %v197, %v196
    %214 = vmatprep.subr.bf16.mxu0 0
    %215 = vmatpush1.bf16.msra.mxu0 %v205
    %216 = vmatprep.subr.bf16.mxu0 0
    %217 = vmatpush1.bf16.msra.mxu0 %v204
    %218 = vmatprep.subr.bf16.mxu0 0
    %219 = vmatpush1.bf16.msra.mxu0 %v203
    %220 = vmatprep.subr.bf16.mxu0 0
    %221 = vmatpush1.bf16.msra.mxu0 %v202
    %222 = vmatprep.subr.bf16.mxu0 0
    %223 = vmatpush1.bf16.msra.mxu0 %v201
    %224 = vmatprep.subr.bf16.mxu0 0
    %225 = vmatpush1.bf16.msra.mxu0 %v200
    %226 = vmatprep.subr.bf16.mxu0 0
    %227 = vmatpush1.bf16.msra.mxu0 %v199
    %228 = vmatprep.subr.bf16.mxu0 0
    %229 = vmatpush1.bf16.msra.mxu0 %v198
    %230 = vmatprep.subr.bf16.mxu0 0
    %231 = vmatpush2.bf16.msra.mxu0 0
    %232 = vmatprep.subr.bf16.mxu0 0
    %233 = vmatpush2.bf16.msra.mxu0 0
    %234 = vmatprep.subr.bf16.mxu0 0
    %235 = vmatpush2.bf16.msra.mxu0 0
    %236 = vmatprep.subr.bf16.mxu0 0
    %237 = vmatpush2.bf16.msra.mxu0 0
    %238 = vmatprep.subr.bf16.mxu0 0
    %239 = vmatpush2.bf16.msra.mxu0 0
    %240 = vmatprep.subr.bf16.mxu0 0
    %241 = vmatpush2.bf16.msra.mxu0 0
    %242 = vmatprep.subr.bf16.mxu0 0
    %243 = vmatpush2.bf16.msra.mxu0 0
    %244 = vmatprep.subr.bf16.mxu0 0
    %245 = vmatpush2.bf16.msra.mxu0 0
    %246 = vmatprep.mubr.bf16.mxu0 0
    %247 = vmatmul.mubr.bf16.gmra.mxu0 %v149
    %v248 = vpop.f32.mrf.mxu0
    %v249 = vadd.f32 0.0, %v248
    %v250 = vpop.f32.mrf.mxu0
    %v251 = vpop.f32.mrf.mxu0
    %v252 = vpop.f32.mrf.mxu0
    %253 = vdwg.mxu0
    %v270 = vunpack.c.l.b16 %v133
    %v271 = vunpack.c.l.b16 %v134
    %v272 = vunpack.c.l.b16 %v135
    %v273 = vunpack.c.l.b16 %v136
    %v274 = vunpack.c.l.b16 %v137
    %v275 = vunpack.c.l.b16 %v138
    %v276 = vunpack.c.l.b16 %v139
    %v277 = vunpack.c.l.b16 %v140
    %v278 = vunpack.c.l.b16 %v141
    %v279 = vunpack.c.l.b16 %v142
    %v280 = vunpack.c.l.b16 %v143
    %v281 = vunpack.c.l.b16 %v144
    %v282 = vunpack.c.l.b16 %v145
    %v283 = vunpack.c.l.b16 %v146
    %v284 = vunpack.c.l.b16 %v147
    %v285 = vunpack.c.l.b16 %v148
    %v286 = vpack.c.b16 %v271, %v270
    %v287 = vpack.c.b16 %v273, %v272
    %v288 = vpack.c.b16 %v275, %v274
    %v289 = vpack.c.b16 %v277, %v276
    %v290 = vpack.c.b16 %v279, %v278
    %v291 = vpack.c.b16 %v281, %v280
    %v292 = vpack.c.b16 %v283, %v282
    %v293 = vpack.c.b16 %v285, %v284
    %302 = vmatprep.subr.bf16.mxu0 0
    %303 = vmatpush1.bf16.msra.mxu0 %v293
    %304 = vmatprep.subr.bf16.mxu0 0
    %305 = vmatpush1.bf16.msra.mxu0 %v292
    %306 = vmatprep.subr.bf16.mxu0 0
    %307 = vmatpush1.bf16.msra.mxu0 %v291
    %308 = vmatprep.subr.bf16.mxu0 0
    %309 = vmatpush1.bf16.msra.mxu0 %v290
    %310 = vmatprep.subr.bf16.mxu0 0
    %311 = vmatpush1.bf16.msra.mxu0 %v289
    %312 = vmatprep.subr.bf16.mxu0 0
    %313 = vmatpush1.bf16.msra.mxu0 %v288
    %314 = vmatprep.subr.bf16.mxu0 0
    %315 = vmatpush1.bf16.msra.mxu0 %v287
    %316 = vmatprep.subr.bf16.mxu0 0
    %317 = vmatpush1.bf16.msra.mxu0 %v286
    %318 = vmatprep.subr.bf16.mxu0 0
    %319 = vmatpush2.bf16.msra.mxu0 0
    %320 = vmatprep.subr.bf16.mxu0 0
    %321 = vmatpush2.bf16.msra.mxu0 0
    %322 = vmatprep.subr.bf16.mxu0 0
    %323 = vmatpush2.bf16.msra.mxu0 0
    %324 = vmatprep.subr.bf16.mxu0 0
    %325 = vmatpush2.bf16.msra.mxu0 0
    %326 = vmatprep.subr.bf16.mxu0 0
    %327 = vmatpush2.bf16.msra.mxu0 0
    %328 = vmatprep.subr.bf16.mxu0 0
    %329 = vmatpush2.bf16.msra.mxu0 0
    %330 = vmatprep.subr.bf16.mxu0 0
    %331 = vmatpush2.bf16.msra.mxu0 0
    %332 = vmatprep.subr.bf16.mxu0 0
    %333 = vmatpush2.bf16.msra.mxu0 0
    %334 = vmatprep.mubr.bf16.mxu0 0
    %335 = vmatmul.mubr.bf16.gmra.mxu0 %v132
    %v336 = vpop.f32.mrf.mxu0
    %v337 = vadd.f32 %v249, %v336
    %v338 = vpop.f32.mrf.mxu0
    %v339 = vpop.f32.mrf.mxu0
    %v340 = vpop.f32.mrf.mxu0
    %341 = vdwg.mxu0
    %v342 = vld [vmem:[%s5] sm:$0x1]
    %v344 = vlaneseq
    %v345 = vshrl.u32 %v344, 7
    %v346 = vsub.s32 0, %v345
    %v347 = vrot.slane %v342, %v346
    %v349 = vadd.f32 %v337, %v347
    %v350 = vtanh.pop %v349
    %v351 = vmul.f32 %v350, %v130
    %v352 = vrot.slane %v351, 4
    %v353 = vadd.f32 %v351, %v352
    %v354 = vrot.slane %v353, 2
    %v355 = vadd.f32 %v353, %v354
    %v356 = vrot.slane %v355, 1
    %v357 = vadd.f32 %v355, %v356
    %v358 = vmul.f32 %v129, %v357
    %v359 = vpack.c.bf16 %v131, %v131
    %v360 = vld [vmem:[#allocation11] sm:$0xf]
    %v361 = vld [vmem:[#allocation11 + $0x4] sm:$0xf]
    %v362 = vld [vmem:[#allocation11 + $0x8] sm:$0xf]
    %v363 = vld [vmem:[#allocation11 + $0xc] sm:$0xf]
    %v364 = vld [vmem:[#allocation11 + $0x10] sm:$0xf]
    %v365 = vld [vmem:[#allocation11 + $0x14] sm:$0xf]
    %v366 = vld [vmem:[#allocation11 + $0x18] sm:$0xf]
    %v367 = vld [vmem:[#allocation11 + $0x1c] sm:$0xf]
    %v368 = vld [vmem:[#allocation11 + $0x20] sm:$0xf]
    %v369 = vld [vmem:[#allocation11 + $0x24] sm:$0xf]
    %v370 = vld [vmem:[#allocation11 + $0x28] sm:$0xf]
    %v371 = vld [vmem:[#allocation11 + $0x2c] sm:$0xf]
    %v372 = vld [vmem:[#allocation11 + $0x30] sm:$0xf]
    %v373 = vld [vmem:[#allocation11 + $0x34] sm:$0xf]
    %v374 = vld [vmem:[#allocation11 + $0x38] sm:$0xf]
    %v375 = vld [vmem:[#allocation11 + $0x3c] sm:$0xf]
    %v376 = vpack.c.bf16 %v358, %v358
    %v377 = vld [vmem:[#allocation13] sm:$0xf]
    %v378 = vld [vmem:[#allocation13 + $0x4] sm:$0xf]
    %v379 = vld [vmem:[#allocation13 + $0x8] sm:$0xf]
    %v380 = vld [vmem:[#allocation13 + $0xc] sm:$0xf]
    %v381 = vld [vmem:[#allocation13 + $0x10] sm:$0xf]
    %v382 = vld [vmem:[#allocation13 + $0x14] sm:$0xf]
    %v383 = vld [vmem:[#allocation13 + $0x18] sm:$0xf]
    %v384 = vld [vmem:[#allocation13 + $0x1c] sm:$0xf]
    %v385 = vld [vmem:[#allocation13 + $0x20] sm:$0xf]
    %v386 = vld [vmem:[#allocation13 + $0x24] sm:$0xf]
    %v387 = vld [vmem:[#allocation13 + $0x28] sm:$0xf]
    %v388 = vld [vmem:[#allocation13 + $0x2c] sm:$0xf]
    %v389 = vld [vmem:[#allocation13 + $0x30] sm:$0xf]
    %v390 = vld [vmem:[#allocation13 + $0x34] sm:$0xf]
    %v391 = vld [vmem:[#allocation13 + $0x38] sm:$0xf]
    %v392 = vld [vmem:[#allocation13 + $0x3c] sm:$0xf]
    %v409 = vunpack.c.l.b16 %v377
    %v410 = vunpack.c.l.b16 %v378
    %v411 = vunpack.c.l.b16 %v379
    %v412 = vunpack.c.l.b16 %v380
    %v413 = vunpack.c.l.b16 %v381
    %v414 = vunpack.c.l.b16 %v382
    %v415 = vunpack.c.l.b16 %v383
    %v416 = vunpack.c.l.b16 %v384
    %v417 = vunpack.c.l.b16 %v385
    %v418 = vunpack.c.l.b16 %v386
    %v419 = vunpack.c.l.b16 %v387
    %v420 = vunpack.c.l.b16 %v388
    %v421 = vunpack.c.l.b16 %v389
    %v422 = vunpack.c.l.b16 %v390
    %v423 = vunpack.c.l.b16 %v391
    %v424 = vunpack.c.l.b16 %v392
    %v425 = vpack.c.b16 %v410, %v409
    %v426 = vpack.c.b16 %v412, %v411
    %v427 = vpack.c.b16 %v414, %v413
    %v428 = vpack.c.b16 %v416, %v415
    %v429 = vpack.c.b16 %v418, %v417
    %v430 = vpack.c.b16 %v420, %v419
    %v431 = vpack.c.b16 %v422, %v421
    %v432 = vpack.c.b16 %v424, %v423
    %441 = vmatprep.subr.bf16.mxu0 0
    %442 = vmatpush1.bf16.msra.mxu0 %v432
    %443 = vmatprep.subr.bf16.mxu0 0
    %444 = vmatpush1.bf16.msra.mxu0 %v431
    %445 = vmatprep.subr.bf16.mxu0 0
    %446 = vmatpush1.bf16.msra.mxu0 %v430
    %447 = vmatprep.subr.bf16.mxu0 0
    %448 = vmatpush1.bf16.msra.mxu0 %v429
    %449 = vmatprep.subr.bf16.mxu0 0
    %450 = vmatpush1.bf16.msra.mxu0 %v428
    %451 = vmatprep.subr.bf16.mxu0 0
    %452 = vmatpush1.bf16.msra.mxu0 %v427
    %453 = vmatprep.subr.bf16.mxu0 0
    %454 = vmatpush1.bf16.msra.mxu0 %v426
    %455 = vmatprep.subr.bf16.mxu0 0
    %456 = vmatpush1.bf16.msra.mxu0 %v425
    %457 = vmatprep.subr.bf16.mxu0 0
    %458 = vmatpush2.bf16.msra.mxu0 0
    %459 = vmatprep.subr.bf16.mxu0 0
    %460 = vmatpush2.bf16.msra.mxu0 0
    %461 = vmatprep.subr.bf16.mxu0 0
    %462 = vmatpush2.bf16.msra.mxu0 0
    %463 = vmatprep.subr.bf16.mxu0 0
    %464 = vmatpush2.bf16.msra.mxu0 0
    %465 = vmatprep.subr.bf16.mxu0 0
    %466 = vmatpush2.bf16.msra.mxu0 0
    %467 = vmatprep.subr.bf16.mxu0 0
    %468 = vmatpush2.bf16.msra.mxu0 0
    %469 = vmatprep.subr.bf16.mxu0 0
    %470 = vmatpush2.bf16.msra.mxu0 0
    %471 = vmatprep.subr.bf16.mxu0 0
    %472 = vmatpush2.bf16.msra.mxu0 0
    %473 = vmatprep.mubr.bf16.mxu0 0
    %474 = vmatmul.mubr.bf16.gmra.mxu0 %v376
    %v475 = vpop.f32.mrf.mxu0
    %v476 = vadd.f32 0.0, %v475
    %v477 = vpop.f32.mrf.mxu0
    %v478 = vpop.f32.mrf.mxu0
    %v479 = vpop.f32.mrf.mxu0
    %480 = vdwg.mxu0
    %v497 = vunpack.c.l.b16 %v360
    %v498 = vunpack.c.l.b16 %v361
    %v499 = vunpack.c.l.b16 %v362
    %v500 = vunpack.c.l.b16 %v363
    %v501 = vunpack.c.l.b16 %v364
    %v502 = vunpack.c.l.b16 %v365
    %v503 = vunpack.c.l.b16 %v366
    %v504 = vunpack.c.l.b16 %v367
    %v505 = vunpack.c.l.b16 %v368
    %v506 = vunpack.c.l.b16 %v369
    %v507 = vunpack.c.l.b16 %v370
    %v508 = vunpack.c.l.b16 %v371
    %v509 = vunpack.c.l.b16 %v372
    %v510 = vunpack.c.l.b16 %v373
    %v511 = vunpack.c.l.b16 %v374
    %v512 = vunpack.c.l.b16 %v375
    %v513 = vpack.c.b16 %v498, %v497
    %v514 = vpack.c.b16 %v500, %v499
    %v515 = vpack.c.b16 %v502, %v501
    %v516 = vpack.c.b16 %v504, %v503
    %v517 = vpack.c.b16 %v506, %v505
    %v518 = vpack.c.b16 %v508, %v507
    %v519 = vpack.c.b16 %v510, %v509
    %v520 = vpack.c.b16 %v512, %v511
    %529 = vmatprep.subr.bf16.mxu0 0
    %530 = vmatpush1.bf16.msra.mxu0 %v520
    %531 = vmatprep.subr.bf16.mxu0 0
    %532 = vmatpush1.bf16.msra.mxu0 %v519
    %533 = vmatprep.subr.bf16.mxu0 0
    %534 = vmatpush1.bf16.msra.mxu0 %v518
    %535 = vmatprep.subr.bf16.mxu0 0
    %536 = vmatpush1.bf16.msra.mxu0 %v517
    %537 = vmatprep.subr.bf16.mxu0 0
    %538 = vmatpush1.bf16.msra.mxu0 %v516
    %539 = vmatprep.subr.bf16.mxu0 0
    %540 = vmatpush1.bf16.msra.mxu0 %v515
    %541 = vmatprep.subr.bf16.mxu0 0
    %542 = vmatpush1.bf16.msra.mxu0 %v514
    %543 = vmatprep.subr.bf16.mxu0 0
    %544 = vmatpush1.bf16.msra.mxu0 %v513
    %545 = vmatprep.subr.bf16.mxu0 0
    %546 = vmatpush2.bf16.msra.mxu0 0
    %547 = vmatprep.subr.bf16.mxu0 0
    %548 = vmatpush2.bf16.msra.mxu0 0
    %549 = vmatprep.subr.bf16.mxu0 0
    %550 = vmatpush2.bf16.msra.mxu0 0
    %551 = vmatprep.subr.bf16.mxu0 0
    %552 = vmatpush2.bf16.msra.mxu0 0
    %553 = vmatprep.subr.bf16.mxu0 0
    %554 = vmatpush2.bf16.msra.mxu0 0
    %555 = vmatprep.subr.bf16.mxu0 0
    %556 = vmatpush2.bf16.msra.mxu0 0
    %557 = vmatprep.subr.bf16.mxu0 0
    %558 = vmatpush2.bf16.msra.mxu0 0
    %559 = vmatprep.subr.bf16.mxu0 0
    %560 = vmatpush2.bf16.msra.mxu0 0
    %561 = vmatprep.mubr.bf16.mxu0 0
    %562 = vmatmul.mubr.bf16.gmra.mxu0 %v359
    %v563 = vpop.f32.mrf.mxu0
    %v564 = vadd.f32 %v476, %v563
    %v565 = vpop.f32.mrf.mxu0
    %v566 = vpop.f32.mrf.mxu0
    %v567 = vpop.f32.mrf.mxu0
    %568 = vdwg.mxu0
    %v569 = vld [vmem:[%s8] sm:$0x1]
    %v571 = vlaneseq
    %v572 = vshrl.u32 %v571, 7
    %v573 = vsub.s32 0, %v572
    %v574 = vrot.slane %v569, %v573
    %v576 = vadd.f32 %v564, %v574
    %v577 = vtanh.pop %v576
    %v578 = vmul.f32 %v577, %v131
    %v579 = vrot.slane %v578, 4
    %v580 = vadd.f32 %v578, %v579
    %v581 = vrot.slane %v580, 2
    %v582 = vadd.f32 %v580, %v581
    %v583 = vrot.slane %v582, 1
    %v584 = vadd.f32 %v582, %v583
    %v585 = vmul.f32 %v584, %v358
    %v586 = vld [vmem:[%s9] sm:$0x1]
    %v588 = vlaneseq
    %v589 = vshrl.u32 %v588, 7
    %v590 = vsub.s32 0, %v589
    %v591 = vrot.slane %v586, %v590
    %v593 = vmul.f32 %v585, %v591
    %594 = vadd.xlane.f32.xlu0 %v593
    %v595 = vpop.xlane.xlu0 %594
    %s596 = sld [smem:[#allocation2]]
    %v597 = vstv %s596
    %v598 = vadd.f32 %v595, %v597
    %vm599 = vcmask 7168
    %600 = vst.msk [vmem:[%s11] sm:$0xff] %vm599, %v598
    // Predicated region
    $region74: #{tpu_custom_call.1} parent=1 // pred_check
      _
    $region75: #{tpu_custom_call.1} parent=1 // pred_check_branch
      %602 = sbr.rel (0) target = $region77
    $region76: #{tpu_custom_call.1} parent=1 // pred_region
      _
    $region77: #{tpu_custom_call.1} parent=1 // pred_fallthru
      _
    // Predicated region
    $region78: #{tpu_custom_call.1} parent=1 // pred_check
      _
    $region79: #{tpu_custom_call.1} parent=1 // pred_check_branch
      %604 = sbr.rel (0) target = $region81
    $region80: #{tpu_custom_call.1} parent=1 // pred_region
      _
    $region81: #{tpu_custom_call.1} parent=1 // pred_fallthru
      _
    %605 = vsyncpa [#allocation4], 1
    %606 = vsyncpa [#allocation6], 1
    %607 = vsyncpa [#allocation9], 1
    %608 = vsyncpa [#allocation12], 1

</llo_original>
